<compile_context>
chip_gen: v7x
topology: tpu7x:2x2x1
jax: 0.10.0
libtpu: 0.0.40
codegen_flags: <defaults>
</compile_context>

<pallas_src>
import functools

import jax
import jax.numpy as jnp
from jax.experimental import pallas as pl
from jax.experimental.pallas import tpu as pltpu

EPS = 1e-5
ACTION_SPACE = 3
H1 = 128
H2 = 256
LANE = 128
OUT_PAD = 128          # lane-dense padded output width; sliced to 3 outside


# --------------------------------------------------------------------------
# Kernel: one grid step processes one independent group (its own BN batch).
# --------------------------------------------------------------------------
def _mlp_kernel(x_ref,
                w1_ref, g1_ref, beta1_ref,
                w2_ref, g2_ref, beta2_ref,
                w3_ref, b3_ref,
                o_ref):
    x = x_ref[...]                                          # (B, S_pad) f32

    # ---- Linear(state_length, 128) ----
    # b1 omitted: exactly cancelled by the training-mode batch-mean subtraction.
    h1 = jnp.dot(x.astype(jnp.bfloat16), w1_ref[...],
                 preferred_element_type=jnp.float32)        # (B, 128) f32

    # ---- BatchNorm1d(128), training mode, folded into one FMA ----
    mu1 = jnp.mean(h1, axis=0, keepdims=True)
    var1 = jnp.mean((h1 - mu1) * (h1 - mu1), axis=0, keepdims=True)  # biased
    scale1 = g1_ref[...] * jax.lax.rsqrt(var1 + EPS)
    shift1 = beta1_ref[...] - mu1 * scale1
    h1 = h1 * scale1 + shift1

    # ---- Linear(128, 256) ----  (b2 omitted, same cancellation)
    h2 = jnp.dot(h1.astype(jnp.bfloat16), w2_ref[...],
                 preferred_element_type=jnp.float32)        # (B, 256) f32

    # ---- BatchNorm1d(256) ----
    mu2 = jnp.mean(h2, axis=0, keepdims=True)
    var2 = jnp.mean((h2 - mu2) * (h2 - mu2), axis=0, keepdims=True)
    scale2 = g2_ref[...] * jax.lax.rsqrt(var2 + EPS)
    shift2 = beta2_ref[...] - mu2 * scale2
    h2 = h2 * scale2 + shift2

    # ---- Linear(256, 3), padded to 128 lanes => unmasked full-lane store ----
    out = jnp.dot(h2.astype(jnp.bfloat16), w3_ref[...],
                  preferred_element_type=jnp.float32) + b3_ref[...]
    o_ref[...] = out


# --------------------------------------------------------------------------
# Wrapper
# --------------------------------------------------------------------------
@functools.partial(jax.jit, static_argnames=())
def neural_network_forward(x, params):
    """x: (G, B, state_length) or (B, state_length) float32.

    Each group of size B gets its own BatchNorm statistics (equivalent to G
    independent forward passes of the PyTorch module, fused into one call).
    Returns (G, B, ACTION_SPACE) (or (B, ACTION_SPACE) for 2-D input).
    """
    squeeze = x.ndim == 2
    if squeeze:
        x = x[None]
    G, B, S = x.shape
    assert B % 8 == 0, "per-group batch must be a multiple of 8 (sublanes)"

    s_pad = params["w1"].shape[0]
    if S < s_pad:
        x = jnp.pad(x, ((0, 0), (0, 0), (0, s_pad - S)))

    operands = (
        x,
        params["w1"], params["g1"], params["beta1"],
        params["w2"], params["g2"], params["beta2"],
        params["w3p"], params["b3p"],
    )

    flops = 2 * G * B * (s_pad * H1 + H1 * H2 + H2 * OUT_PAD)
    bytes_accessed = (x.size * x.dtype.itemsize
                      + G * B * OUT_PAD * 4
                      + sum(int(p.size) * p.dtype.itemsize for p in operands[1:]))
    cost = pl.CostEstimate(flops=flops,
                           transcendentals=G * (H1 + H2),
                           bytes_accessed=bytes_accessed)

    out = pl.pallas_call(
        _mlp_kernel,
        out_shape=jax.ShapeDtypeStruct((G, B, OUT_PAD), jnp.float32),
        grid=(G,),
        in_specs=[
            pl.BlockSpec((None, B, s_pad), lambda g: (g, 0, 0)),   # x
            pl.BlockSpec((s_pad, H1), lambda g: (0, 0)),           # w1 (bf16)
            pl.BlockSpec((1, H1), lambda g: (0, 0)),               # gamma1
            pl.BlockSpec((1, H1), lambda g: (0, 0)),               # beta1
            pl.BlockSpec((H1, H2), lambda g: (0, 0)),              # w2 (bf16)
            pl.BlockSpec((1, H2), lambda g: (0, 0)),               # gamma2
            pl.BlockSpec((1, H2), lambda g: (0, 0)),               # beta2
            pl.BlockSpec((H2, OUT_PAD), lambda g: (0, 0)),         # w3 padded
            pl.BlockSpec((1, OUT_PAD), lambda g: (0, 0)),          # b3 padded
        ],
        out_specs=pl.BlockSpec((None, B, OUT_PAD), lambda g: (g, 0, 0)),
        compiler_params=pltpu.CompilerParams(
            dimension_semantics=("parallel",)),
        cost_estimate=cost,
    )(*operands)

    out = out[..., :ACTION_SPACE]
    return out[0] if squeeze else out


# --------------------------------------------------------------------------
# Parameter init (deterministic synthetic weights matching PyTorch shapes)
# --------------------------------------------------------------------------
def init_params(key, state_length):
    """Returns (kernel_params, torch_params).

    torch_params hold the PyTorch-layout f32 weights/biases (for reference);
    kernel_params hold the kernel-side layout: weights pre-transposed to
    (in, out), bf16, first-layer K padded to 128, last-layer out padded to 128.
    b1/b2 are not passed to the kernel (cancelled by training-mode BN).
    """
    s_pad = max(LANE, ((state_length + LANE - 1) // LANE) * LANE)
    ks = jax.random.split(key, 3)

    def lin(k, fan_in, fan_out):
        bound = 1.0 / jnp.sqrt(fan_in)
        kw, kb = jax.random.split(k)
        w = jax.random.uniform(kw, (fan_in, fan_out), jnp.float32, -bound, bound)
        b = jax.random.uniform(kb, (1, fan_out), jnp.float32, -bound, bound)
        return w, b

    w1, b1 = lin(ks[0], state_length, H1)
    w2, b2 = lin(ks[1], H1, H2)
    w3, b3 = lin(ks[2], H2, ACTION_SPACE)

    w1p = jnp.zeros((s_pad, H1), jnp.bfloat16).at[:state_length].set(
        w1.astype(jnp.bfloat16))
    w3p = jnp.zeros((H2, OUT_PAD), jnp.bfloat16).at[:, :ACTION_SPACE].set(
        w3.astype(jnp.bfloat16))
    b3p = jnp.zeros((1, OUT_PAD), jnp.float32).at[:, :ACTION_SPACE].set(b3)

    kernel_params = {
        "w1": w1p,
        "g1": jnp.ones((1, H1), jnp.float32),
        "beta1": jnp.zeros((1, H1), jnp.float32),
        "w2": w2.astype(jnp.bfloat16),
        "g2": jnp.ones((1, H2), jnp.float32),
        "beta2": jnp.zeros((1, H2), jnp.float32),
        "w3p": w3p,
        "b3p": b3p,
    }
    torch_params = {"w1": w1, "b1": b1, "w2": w2, "b2": b2, "w3": w3, "b3": b3}
    return kernel_params, torch_params


# --------------------------------------------------------------------------
# References
# --------------------------------------------------------------------------
def _reference_exact(x, kp, tp):
    """Pure-f32 PyTorch-equivalent forward (training-mode BatchNorm1d)."""
    h1 = x @ tp["w1"] + tp["b1"]
    mu = h1.mean(0, keepdims=True)
    var = ((h1 - mu) ** 2).mean(0, keepdims=True)
    h1 = (h1 - mu) / jnp.sqrt(var + EPS) * kp["g1"] + kp["beta1"]
    h2 = h1 @ tp["w2"] + tp["b2"]
    mu = h2.mean(0, keepdims=True)
    var = ((h2 - mu) ** 2).mean(0, keepdims=True)
    h2 = (h2 - mu) / jnp.sqrt(var + EPS) * kp["g2"] + kp["beta2"]
    return h2 @ tp["w3"] + tp["b3"]


def _reference_kernel_math(x, kp):
    """Mimics the kernel's bf16-weight / f32-accumulate math exactly."""
    s_pad = kp["w1"].shape[0]
    xb = jnp.pad(x, ((0, 0), (0, s_pad - x.shape[-1])))
    h1 = jnp.dot(xb.astype(jnp.bfloat16), kp["w1"],
                 preferred_element_type=jnp.float32)
    mu = h1.mean(0, keepdims=True)
    var = ((h1 - mu) ** 2).mean(0, keepdims=True)
    sc = kp["g1"] * jax.lax.rsqrt(var + EPS)
    h1 = h1 * sc + (kp["beta1"] - mu * sc)
    h2 = jnp.dot(h1.astype(jnp.bfloat16), kp["w2"],
                 preferred_element_type=jnp.float32)
    mu = h2.mean(0, keepdims=True)
    var = ((h2 - mu) ** 2).mean(0, keepdims=True)
    sc = kp["g2"] * jax.lax.rsqrt(var + EPS)
    h2 = h2 * sc + (kp["beta2"] - mu * sc)
    out = jnp.dot(h2.astype(jnp.bfloat16), kp["w3p"],
                  preferred_element_type=jnp.float32) + kp["b3p"]
    return out[:, :ACTION_SPACE]


# --------------------------------------------------------------------------
if __name__ == "__main__":
    key = jax.random.PRNGKey(0)
    k_param, k_x = jax.random.split(key)

    groups = 4            # independent BN groups fused into one pallas_call
    batch = 8             # per-group batch (BN statistics computed per group)
    state_length = 32

    kernel_params, torch_params = init_params(k_param, state_length)
    x = jax.random.normal(k_x, (groups, batch, state_length), jnp.float32)

    out = neural_network_forward(x, kernel_params)
    out = jax.block_until_ready(out)
    assert out.shape == (groups, batch, ACTION_SPACE)

    for g in range(groups):
        ref_bits = _reference_kernel_math(x[g], kernel_params)
        ref_f32 = _reference_exact(x[g], kernel_params, torch_params)
        # Tight check against bit-equivalent math (bf16 weights, f32 accumulate).
        assert jnp.allclose(out[g], ref_bits, atol=2e-3, rtol=2e-3), \
            f"group {g}: mismatch vs kernel-math reference"
        # Loose check against the exact f32 PyTorch semantics (bf16 weight error).
        assert jnp.allclose(out[g], ref_f32, atol=5e-2, rtol=5e-2), \
            f"group {g}: mismatch vs exact f32 reference"

    print("KERNEL_OK")
</pallas_src>

<mosaic_0001>
module attributes {stable_mosaic.version = 11 : i64} {
  func.func @_mlp_kernel(%arg0: i32, %arg1: memref<1x8x128xf32, #tpu.memory_space<vmem>>, %arg2: memref<128x128xbf16, #tpu.memory_space<vmem>>, %arg3: memref<1x128xf32, #tpu.memory_space<vmem>>, %arg4: memref<1x128xf32, #tpu.memory_space<vmem>>, %arg5: memref<128x256xbf16, #tpu.memory_space<vmem>>, %arg6: memref<1x256xf32, #tpu.memory_space<vmem>>, %arg7: memref<1x256xf32, #tpu.memory_space<vmem>>, %arg8: memref<256x128xbf16, #tpu.memory_space<vmem>>, %arg9: memref<1x128xf32, #tpu.memory_space<vmem>>, %arg10: memref<1x8x128xf32, #tpu.memory_space<vmem>>) attributes {dimension_semantics = [#tpu.dimension_semantics<parallel>], iteration_bounds = array<i64: 4>, scalar_prefetch = 0 : i64, scratch_operands = 0 : i64, tpu.core_type = #tpu.core_type<tc>, window_params = [{transform_indices = @transform_0, window_bounds = array<i64: 1, 8, 128>}, {pipeline_mode = #tpu.pipeline_mode<synchronous>, transform_indices = @transform_1, window_bounds = array<i64: 128, 128>}, {pipeline_mode = #tpu.pipeline_mode<synchronous>, transform_indices = @transform_2, window_bounds = array<i64: 1, 128>}, {pipeline_mode = #tpu.pipeline_mode<synchronous>, transform_indices = @transform_3, window_bounds = array<i64: 1, 128>}, {pipeline_mode = #tpu.pipeline_mode<synchronous>, transform_indices = @transform_4, window_bounds = array<i64: 128, 256>}, {pipeline_mode = #tpu.pipeline_mode<synchronous>, transform_indices = @transform_5, window_bounds = array<i64: 1, 256>}, {pipeline_mode = #tpu.pipeline_mode<synchronous>, transform_indices = @transform_6, window_bounds = array<i64: 1, 256>}, {pipeline_mode = #tpu.pipeline_mode<synchronous>, transform_indices = @transform_7, window_bounds = array<i64: 256, 128>}, {pipeline_mode = #tpu.pipeline_mode<synchronous>, transform_indices = @transform_8, window_bounds = array<i64: 1, 128>}, {transform_indices = @transform_9, window_bounds = array<i64: 1, 8, 128>}]} {
    %c0 = arith.constant 0 : index
    %c0_0 = arith.constant 0 : index
    %c0_1 = arith.constant 0 : index
    %0 = vector.load %arg1[%c0, %c0_0, %c0_1] : memref<1x8x128xf32, #tpu.memory_space<vmem>>, vector<1x8x128xf32>
    %1 = vector.shape_cast %0 : vector<1x8x128xf32> to vector<8x128xf32>
    %2 = arith.truncf %1 : vector<8x128xf32> to vector<8x128xbf16>
    %c0_2 = arith.constant 0 : index
    %c0_3 = arith.constant 0 : index
    %3 = vector.load %arg2[%c0_2, %c0_3] : memref<128x128xbf16, #tpu.memory_space<vmem>>, vector<128x128xbf16>
    %cst = arith.constant dense<0.000000e+00> : vector<8x128xf32>
    %4 = tpu.matmul %2, %3, %cst {dimension_numbers = #tpu.dot_dimension_numbers<[1], [0], [0], [1], [0, 0, 1, 1], [], []>} : vector<8x128xbf16>, vector<128x128xbf16>, vector<8x128xf32> -> vector<8x128xf32>
    %cst_4 = arith.constant dense<0.000000e+00> : vector<128xf32>
    %5 = vector.multi_reduction <add>, %4, %cst_4 [0] : vector<8x128xf32> to vector<128xf32>
    %6 = vector.shape_cast %5 : vector<128xf32> to vector<1x128xf32>
    %cst_5 = arith.constant 8.000000e+00 : f32
    %7 = vector.broadcast %cst_5 : f32 to vector<1x128xf32>
    %8 = arith.divf %6, %7 : vector<1x128xf32>
    %9 = vector.broadcast %8 : vector<1x128xf32> to vector<8x128xf32>
    %10 = arith.subf %4, %9 : vector<8x128xf32>
    %11 = vector.broadcast %8 : vector<1x128xf32> to vector<8x128xf32>
    %12 = arith.subf %4, %11 : vector<8x128xf32>
    %13 = arith.mulf %10, %12 : vector<8x128xf32>
    %cst_6 = arith.constant dense<0.000000e+00> : vector<128xf32>
    %14 = vector.multi_reduction <add>, %13, %cst_6 [0] : vector<8x128xf32> to vector<128xf32>
    %15 = vector.shape_cast %14 : vector<128xf32> to vector<1x128xf32>
    %cst_7 = arith.constant 8.000000e+00 : f32
    %16 = vector.broadcast %cst_7 : f32 to vector<1x128xf32>
    %17 = arith.divf %15, %16 : vector<1x128xf32>
    %c0_8 = arith.constant 0 : index
    %c0_9 = arith.constant 0 : index
    %18 = vector.load %arg3[%c0_8, %c0_9] : memref<1x128xf32, #tpu.memory_space<vmem>>, vector<1x128xf32>
    %cst_10 = arith.constant 9.99999974E-6 : f32
    %19 = vector.broadcast %cst_10 : f32 to vector<1x128xf32>
    %20 = arith.addf %17, %19 : vector<1x128xf32>
    %21 = math.rsqrt %20 : vector<1x128xf32>
    %22 = arith.mulf %18, %21 : vector<1x128xf32>
    %c0_11 = arith.constant 0 : index
    %c0_12 = arith.constant 0 : index
    %23 = vector.load %arg4[%c0_11, %c0_12] : memref<1x128xf32, #tpu.memory_space<vmem>>, vector<1x128xf32>
    %24 = arith.mulf %8, %22 : vector<1x128xf32>
    %25 = arith.subf %23, %24 : vector<1x128xf32>
    %26 = vector.broadcast %22 : vector<1x128xf32> to vector<8x128xf32>
    %27 = arith.mulf %4, %26 : vector<8x128xf32>
    %28 = vector.broadcast %25 : vector<1x128xf32> to vector<8x128xf32>
    %29 = arith.addf %27, %28 : vector<8x128xf32>
    %30 = arith.truncf %29 : vector<8x128xf32> to vector<8x128xbf16>
    %c0_13 = arith.constant 0 : index
    %c0_14 = arith.constant 0 : index
    %31 = vector.load %arg5[%c0_13, %c0_14] : memref<128x256xbf16, #tpu.memory_space<vmem>>, vector<128x256xbf16>
    %cst_15 = arith.constant dense<0.000000e+00> : vector<8x256xf32>
    %32 = tpu.matmul %30, %31, %cst_15 {dimension_numbers = #tpu.dot_dimension_numbers<[1], [0], [0], [1], [0, 0, 1, 1], [], []>} : vector<8x128xbf16>, vector<128x256xbf16>, vector<8x256xf32> -> vector<8x256xf32>
    %cst_16 = arith.constant dense<0.000000e+00> : vector<256xf32>
    %33 = vector.multi_reduction <add>, %32, %cst_16 [0] : vector<8x256xf32> to vector<256xf32>
    %34 = vector.shape_cast %33 : vector<256xf32> to vector<1x256xf32>
    %cst_17 = arith.constant 8.000000e+00 : f32
    %35 = vector.broadcast %cst_17 : f32 to vector<1x256xf32>
    %36 = arith.divf %34, %35 : vector<1x256xf32>
    %37 = vector.broadcast %36 : vector<1x256xf32> to vector<8x256xf32>
    %38 = arith.subf %32, %37 : vector<8x256xf32>
    %39 = vector.broadcast %36 : vector<1x256xf32> to vector<8x256xf32>
    %40 = arith.subf %32, %39 : vector<8x256xf32>
    %41 = arith.mulf %38, %40 : vector<8x256xf32>
    %cst_18 = arith.constant dense<0.000000e+00> : vector<256xf32>
    %42 = vector.multi_reduction <add>, %41, %cst_18 [0] : vector<8x256xf32> to vector<256xf32>
    %43 = vector.shape_cast %42 : vector<256xf32> to vector<1x256xf32>
    %cst_19 = arith.constant 8.000000e+00 : f32
    %44 = vector.broadcast %cst_19 : f32 to vector<1x256xf32>
    %45 = arith.divf %43, %44 : vector<1x256xf32>
    %c0_20 = arith.constant 0 : index
    %c0_21 = arith.constant 0 : index
    %46 = vector.load %arg6[%c0_20, %c0_21] : memref<1x256xf32, #tpu.memory_space<vmem>>, vector<1x256xf32>
    %cst_22 = arith.constant 9.99999974E-6 : f32
    %47 = vector.broadcast %cst_22 : f32 to vector<1x256xf32>
    %48 = arith.addf %45, %47 : vector<1x256xf32>
    %49 = math.rsqrt %48 : vector<1x256xf32>
    %50 = arith.mulf %46, %49 : vector<1x256xf32>
    %c0_23 = arith.constant 0 : index
    %c0_24 = arith.constant 0 : index
    %51 = vector.load %arg7[%c0_23, %c0_24] : memref<1x256xf32, #tpu.memory_space<vmem>>, vector<1x256xf32>
    %52 = arith.mulf %36, %50 : vector<1x256xf32>
    %53 = arith.subf %51, %52 : vector<1x256xf32>
    %54 = vector.broadcast %50 : vector<1x256xf32> to vector<8x256xf32>
    %55 = arith.mulf %32, %54 : vector<8x256xf32>
    %56 = vector.broadcast %53 : vector<1x256xf32> to vector<8x256xf32>
    %57 = arith.addf %55, %56 : vector<8x256xf32>
    %58 = arith.truncf %57 : vector<8x256xf32> to vector<8x256xbf16>
    %c0_25 = arith.constant 0 : index
    %c0_26 = arith.constant 0 : index
    %59 = vector.load %arg8[%c0_25, %c0_26] : memref<256x128xbf16, #tpu.memory_space<vmem>>, vector<256x128xbf16>
    %cst_27 = arith.constant dense<0.000000e+00> : vector<8x128xf32>
    %60 = tpu.matmul %58, %59, %cst_27 {dimension_numbers = #tpu.dot_dimension_numbers<[1], [0], [0], [1], [0, 0, 1, 1], [], []>} : vector<8x256xbf16>, vector<256x128xbf16>, vector<8x128xf32> -> vector<8x128xf32>
    %c0_28 = arith.constant 0 : index
    %c0_29 = arith.constant 0 : index
    %61 = vector.load %arg9[%c0_28, %c0_29] : memref<1x128xf32, #tpu.memory_space<vmem>>, vector<1x128xf32>
    %62 = vector.broadcast %61 : vector<1x128xf32> to vector<8x128xf32>
    %63 = arith.addf %60, %62 : vector<8x128xf32>
    %c0_30 = arith.constant 0 : index
    %c0_31 = arith.constant 0 : index
    %c0_32 = arith.constant 0 : index
    %64 = vector.load %arg10[%c0_30, %c0_31, %c0_32] : memref<1x8x128xf32, #tpu.memory_space<vmem>>, vector<1x8x128xf32>
    %65 = vector.shape_cast %64 : vector<1x8x128xf32> to vector<8x128xf32>
    %66 = vector.shape_cast %63 : vector<8x128xf32> to vector<1x8x128xf32>
    tpu.vector_store %arg10[%c0_30, %c0_31, %c0_32], %66 {strides = array<i32>} : memref<1x8x128xf32, #tpu.memory_space<vmem>>, vector<1x8x128xf32>,
    return
  }
  func.func @transform_0(%arg0: i32) -> (i32, i32, i32) {
    %c0_i32 = arith.constant 0 : i32
    %c0_i32_0 = arith.constant 0 : i32
    %c0_i32_1 = arith.constant 0 : i32
    return %arg0, %c0_i32, %c0_i32_0 : i32, i32, i32
  }
  func.func @transform_1(%arg0: i32) -> (i32, i32) {
    %c0_i32 = arith.constant 0 : i32
    %c0_i32_0 = arith.constant 0 : i32
    %c0_i32_1 = arith.constant 0 : i32
    return %c0_i32, %c0_i32_0 : i32, i32
  }
  func.func @transform_2(%arg0: i32) -> (i32, i32) {
    %c0_i32 = arith.constant 0 : i32
    %c0_i32_0 = arith.constant 0 : i32
    %c0_i32_1 = arith.constant 0 : i32
    return %c0_i32, %c0_i32_0 : i32, i32
  }
  func.func @transform_3(%arg0: i32) -> (i32, i32) {
    %c0_i32 = arith.constant 0 : i32
    %c0_i32_0 = arith.constant 0 : i32
    %c0_i32_1 = arith.constant 0 : i32
    return %c0_i32, %c0_i32_0 : i32, i32
  }
  func.func @transform_4(%arg0: i32) -> (i32, i32) {
    %c0_i32 = arith.constant 0 : i32
    %c0_i32_0 = arith.constant 0 : i32
    %c0_i32_1 = arith.constant 0 : i32
    return %c0_i32, %c0_i32_0 : i32, i32
  }
  func.func @transform_5(%arg0: i32) -> (i32, i32) {
    %c0_i32 = arith.constant 0 : i32
    %c0_i32_0 = arith.constant 0 : i32
    %c0_i32_1 = arith.constant 0 : i32
    return %c0_i32, %c0_i32_0 : i32, i32
  }
  func.func @transform_6(%arg0: i32) -> (i32, i32) {
    %c0_i32 = arith.constant 0 : i32
    %c0_i32_0 = arith.constant 0 : i32
    %c0_i32_1 = arith.constant 0 : i32
    return %c0_i32, %c0_i32_0 : i32, i32
  }
  func.func @transform_7(%arg0: i32) -> (i32, i32) {
    %c0_i32 = arith.constant 0 : i32
    %c0_i32_0 = arith.constant 0 : i32
    %c0_i32_1 = arith.constant 0 : i32
    return %c0_i32, %c0_i32_0 : i32, i32
  }
  func.func @transform_8(%arg0: i32) -> (i32, i32) {
    %c0_i32 = arith.constant 0 : i32
    %c0_i32_0 = arith.constant 0 : i32
    %c0_i32_1 = arith.constant 0 : i32
    return %c0_i32, %c0_i32_0 : i32, i32
  }
  func.func @transform_9(%arg0: i32) -> (i32, i32, i32) {
    %c0_i32 = arith.constant 0 : i32
    %c0_i32_0 = arith.constant 0 : i32
    %c0_i32_1 = arith.constant 0 : i32
    return %arg0, %c0_i32, %c0_i32_0 : i32, i32, i32
  }
}

</mosaic_0001>

<llo_original>
// kernel: neural_network_forward.1
$region0: #{neural_network_forward.1}
  #allocation0 [shape = 'u32[]', space=smem, size = 0x4, offset = 0x4, fixed_abs, tag = 'smem constant byte address 0x4 - core index']
  #allocation1 [shape = 'u32[144,128]{1,0:T(1,128)}', space=vmem, size = 0x12000, scoped, tag = 'internal scratch']
  %s0 = inlined_call_operand.vmem [shape: f32[4,8,128], index: 0, kind: input, shape index: {}]
  %s1 = inlined_call_operand.vmem [shape: bf16[128,128], index: 1, kind: input, shape index: {}]
  %s2 = inlined_call_operand.vmem [shape: f32[1,128], index: 2, kind: input, shape index: {}]
  %s3 = inlined_call_operand.vmem [shape: f32[1,128], index: 3, kind: input, shape index: {}]
  %s4 = inlined_call_operand.hbm [shape: bf16[128,256], index: 4, kind: input, shape index: {}]
  %s5 = inlined_call_operand.vmem [shape: f32[1,256], index: 5, kind: input, shape index: {}]
  %s6 = inlined_call_operand.vmem [shape: f32[1,256], index: 6, kind: input, shape index: {}]
  %s7 = inlined_call_operand.hbm [shape: bf16[256,128], index: 7, kind: input, shape index: {}]
  %s8 = inlined_call_operand.vmem [shape: f32[1,128], index: 8, kind: input, shape index: {}]
  %s9 = inlined_call_operand.vmem [shape: f32[4,8,128], index: 9, kind: output, shape index: {}]
  %s10 = sld [smem:[#allocation0]]
  $region77: #{neural_network_forward.1} parent=0
    _
  %s12 = ssub.s32 1, %s10
  %s13 = scalar_select 0, %s12, %s10
  $region1: #{neural_network_forward.1} parent=0
    #allocation2 [shape = 'u8[65536]{0}', space=vmem, size = 0x10000, scoped, tag = 'input window, operand 4, single buffered']
    #allocation3 [shape = 's32[2]{0}', space=sflag, size = 0x8, scoped, tag = 'scoped memory for neural_network_forward.1']
    #allocation4 [shape = 'u8[65536]{0}', space=vmem, size = 0x10000, scoped, tag = 'input window, operand 7, single buffered']
    #allocation5 [shape = 's32[1]{0}', space=sflag, size = 0x4, scoped, tag = 'scoped memory for neural_network_forward.1']
    %14 = vsyncpa [#allocation3], 0
    %15 = vsyncpa [#allocation5], 0
    loop: start=0, step=1, limit=6
    $region2: #{neural_network_forward.1} parent=1 // loop_pre_header
      _
    $region3: #{neural_network_forward.1} parent=1 // loop_header
      %s17 = sphi 0, %s21
      %p18 = scmp.ge.s32.totalorder %s17, 6
      %s27 = sphi 0, %s29
      %s30 = sphi 0, %s27
      %s31 = sphi 0, %s30
      %s47 = sphi 0, %s31
      %s51 = sphi 0, %s51
      %s53 = sphi 0, %s51
      %s54 = sphi 0, %s53
      %s68 = sphi 0, %s54
      %s72 = sphi 0, %s72
      %s74 = sphi 0, %s72
      %s75 = sphi 0, %s74
      %s89 = sphi 0, %s75
      %s93 = sphi 0, %s93
      %s95 = sphi 0, %s93
      %s96 = sphi 0, %s95
      %s110 = sphi 0, %s96
      %s114 = sphi 0, %s114
      %s116 = sphi 0, %s114
      %s117 = sphi 0, %s116
      %s131 = sphi 0, %s117
      %s135 = sphi 0, %s135
      %s137 = sphi 0, %s135
      %s138 = sphi 0, %s137
      %s152 = sphi 0, %s138
      %s156 = sphi 0, %s156
      %s158 = sphi 0, %s156
      %s159 = sphi 0, %s158
      %s173 = sphi 0, %s159
      %s177 = sphi 0, %s177
      %s179 = sphi 0, %s177
      %s180 = sphi 0, %s179
      %s194 = sphi 0, %s180
      %s198 = sphi 0, %s198
      %s200 = sphi 0, %s198
      %s201 = sphi 0, %s200
      %s215 = sphi 0, %s201
      %s221 = sphi 0, %s223
      %s224 = sphi 0, %s221
      %s225 = sphi 0, %s224
      %s241 = sphi 0, %s225
    $region4: #{neural_network_forward.1} parent=1 // loop_header_branch
      %20 = sbr.rel (%p18) target = $region8
    $region5: #{neural_network_forward.1} parent=1 // loop_body
      %s22 = ssub.s32 %s17, 1
      %s23 = ssub.s32 %s17, 2
      %s24 = sadd.s32 %s17, 1
      %s25 = ssub.s32 %s17, %s24
      %p26 = scmp.eq.s32.totalorder %s25, 0
      %s28 = sadd.s32 %s27, 1
      %s29 = scalar_select %p26, %s27, %s28
      %p32 = pneg %p26
      %p33 = scmp.eq.s32.totalorder %s17, 3
      %p34 = por %p32, %p33
      %p35 = scmp.ne.s32.totalorder %s27, %s30
      %p36 = scmp.eq.s32.totalorder %s17, 0
      %p37 = por %p35, %p36
      %p38 = scmp.ne.s32.totalorder %s27, %s30
      %p39 = scmp.eq.s32.totalorder %s22, 3
      %p40 = por %p38, %p39
      %p41 = scmp.ne.s32.totalorder %s30, %s31
      %p42 = scmp.eq.s32.totalorder %s22, 0
      %p43 = por %p41, %p42
      %p44 = scmp.ne.s32.totalorder %s30, %s31
      %p45 = scmp.eq.s32.totalorder %s23, 3
      %p46 = por %p44, %p45
      %p48 = scmp.ne.s32.totalorder %s31, %s47
      %p49 = scmp.eq.s32.totalorder %s23, 0
      %p50 = por %p48, %p49
      %s52 = sadd.s32 %s51, 1
      %p55 = scmp.eq.s32.totalorder %s17, 3
      %p56 = scmp.ne.s32.totalorder %s51, %s53
      %p57 = scmp.eq.s32.totalorder %s17, 0
      %p58 = por %p56, %p57
      %p59 = scmp.ne.s32.totalorder %s51, %s53
      %p60 = scmp.eq.s32.totalorder %s22, 3
      %p61 = por %p59, %p60
      %p62 = scmp.ne.s32.totalorder %s53, %s54
      %p63 = scmp.eq.s32.totalorder %s22, 0
      %p64 = por %p62, %p63
      %p65 = scmp.ne.s32.totalorder %s53, %s54
      %p66 = scmp.eq.s32.totalorder %s23, 3
      %p67 = por %p65, %p66
      %p69 = scmp.ne.s32.totalorder %s54, %s68
      %p70 = scmp.eq.s32.totalorder %s23, 0
      %p71 = por %p69, %p70
      %s73 = sadd.s32 %s72, 1
      %p76 = scmp.eq.s32.totalorder %s17, 3
      %p77 = scmp.ne.s32.totalorder %s72, %s74
      %p78 = scmp.eq.s32.totalorder %s17, 0
      %p79 = por %p77, %p78
      %p80 = scmp.ne.s32.totalorder %s72, %s74
      %p81 = scmp.eq.s32.totalorder %s22, 3
      %p82 = por %p80, %p81
      %p83 = scmp.ne.s32.totalorder %s74, %s75
      %p84 = scmp.eq.s32.totalorder %s22, 0
      %p85 = por %p83, %p84
      %p86 = scmp.ne.s32.totalorder %s74, %s75
      %p87 = scmp.eq.s32.totalorder %s23, 3
      %p88 = por %p86, %p87
      %p90 = scmp.ne.s32.totalorder %s75, %s89
      %p91 = scmp.eq.s32.totalorder %s23, 0
      %p92 = por %p90, %p91
      %s94 = sadd.s32 %s93, 1
      %p97 = scmp.eq.s32.totalorder %s17, 3
      %p98 = scmp.ne.s32.totalorder %s93, %s95
      %p99 = scmp.eq.s32.totalorder %s17, 0
      %p100 = por %p98, %p99
      %p101 = scmp.ne.s32.totalorder %s93, %s95
      %p102 = scmp.eq.s32.totalorder %s22, 3
      %p103 = por %p101, %p102
      %p104 = scmp.ne.s32.totalorder %s95, %s96
      %p105 = scmp.eq.s32.totalorder %s22, 0
      %p106 = por %p104, %p105
      %p107 = scmp.ne.s32.totalorder %s95, %s96
      %p108 = scmp.eq.s32.totalorder %s23, 3
      %p109 = por %p107, %p108
      %p111 = scmp.ne.s32.totalorder %s96, %s110
      %p112 = scmp.eq.s32.totalorder %s23, 0
      %p113 = por %p111, %p112
      %s115 = sadd.s32 %s114, 1
      %p118 = scmp.eq.s32.totalorder %s17, 3
      %p119 = scmp.ne.s32.totalorder %s114, %s116
      %p120 = scmp.eq.s32.totalorder %s17, 0
      %p121 = por %p119, %p120
      %p122 = scmp.ne.s32.totalorder %s114, %s116
      %p123 = scmp.eq.s32.totalorder %s22, 3
      %p124 = por %p122, %p123
      %p125 = scmp.ne.s32.totalorder %s116, %s117
      %p126 = scmp.eq.s32.totalorder %s22, 0
      %p127 = por %p125, %p126
      %p128 = scmp.ne.s32.totalorder %s116, %s117
      %p129 = scmp.eq.s32.totalorder %s23, 3
      %p130 = por %p128, %p129
      %p132 = scmp.ne.s32.totalorder %s117, %s131
      %p133 = scmp.eq.s32.totalorder %s23, 0
      %p134 = por %p132, %p133
      %s136 = sadd.s32 %s135, 1
      %p139 = scmp.eq.s32.totalorder %s17, 3
      %p140 = scmp.ne.s32.totalorder %s135, %s137
      %p141 = scmp.eq.s32.totalorder %s17, 0
      %p142 = por %p140, %p141
      %p143 = scmp.ne.s32.totalorder %s135, %s137
      %p144 = scmp.eq.s32.totalorder %s22, 3
      %p145 = por %p143, %p144
      %p146 = scmp.ne.s32.totalorder %s137, %s138
      %p147 = scmp.eq.s32.totalorder %s22, 0
      %p148 = por %p146, %p147
      %p149 = scmp.ne.s32.totalorder %s137, %s138
      %p150 = scmp.eq.s32.totalorder %s23, 3
      %p151 = por %p149, %p150
      %p153 = scmp.ne.s32.totalorder %s138, %s152
      %p154 = scmp.eq.s32.totalorder %s23, 0
      %p155 = por %p153, %p154
      %s157 = sadd.s32 %s156, 1
      %p160 = scmp.eq.s32.totalorder %s17, 3
      %p161 = scmp.ne.s32.totalorder %s156, %s158
      %p162 = scmp.eq.s32.totalorder %s17, 0
      %p163 = por %p161, %p162
      %p164 = scmp.ne.s32.totalorder %s156, %s158
      %p165 = scmp.eq.s32.totalorder %s22, 3
      %p166 = por %p164, %p165
      %p167 = scmp.ne.s32.totalorder %s158, %s159
      %p168 = scmp.eq.s32.totalorder %s22, 0
      %p169 = por %p167, %p168
      %p170 = scmp.ne.s32.totalorder %s158, %s159
      %p171 = scmp.eq.s32.totalorder %s23, 3
      %p172 = por %p170, %p171
      %p174 = scmp.ne.s32.totalorder %s159, %s173
      %p175 = scmp.eq.s32.totalorder %s23, 0
      %p176 = por %p174, %p175
      %s178 = sadd.s32 %s177, 1
      %p181 = scmp.eq.s32.totalorder %s17, 3
      %p182 = scmp.ne.s32.totalorder %s177, %s179
      %p183 = scmp.eq.s32.totalorder %s17, 0
      %p184 = por %p182, %p183
      %p185 = scmp.ne.s32.totalorder %s177, %s179
      %p186 = scmp.eq.s32.totalorder %s22, 3
      %p187 = por %p185, %p186
      %p188 = scmp.ne.s32.totalorder %s179, %s180
      %p189 = scmp.eq.s32.totalorder %s22, 0
      %p190 = por %p188, %p189
      %p191 = scmp.ne.s32.totalorder %s179, %s180
      %p192 = scmp.eq.s32.totalorder %s23, 3
      %p193 = por %p191, %p192
      %p195 = scmp.ne.s32.totalorder %s180, %s194
      %p196 = scmp.eq.s32.totalorder %s23, 0
      %p197 = por %p195, %p196
      %s199 = sadd.s32 %s198, 1
      %p202 = scmp.eq.s32.totalorder %s17, 3
      %p203 = scmp.ne.s32.totalorder %s198, %s200
      %p204 = scmp.eq.s32.totalorder %s17, 0
      %p205 = por %p203, %p204
      %p206 = scmp.ne.s32.totalorder %s198, %s200
      %p207 = scmp.eq.s32.totalorder %s22, 3
      %p208 = por %p206, %p207
      %p209 = scmp.ne.s32.totalorder %s200, %s201
      %p210 = scmp.eq.s32.totalorder %s22, 0
      %p211 = por %p209, %p210
      %p212 = scmp.ne.s32.totalorder %s200, %s201
      %p213 = scmp.eq.s32.totalorder %s23, 3
      %p214 = por %p212, %p213
      %p216 = scmp.ne.s32.totalorder %s201, %s215
      %p217 = scmp.eq.s32.totalorder %s23, 0
      %p218 = por %p216, %p217
      %s219 = ssub.s32 %s17, %s24
      %p220 = scmp.eq.s32.totalorder %s219, 0
      %s222 = sadd.s32 %s221, 1
      %s223 = scalar_select %p220, %s221, %s222
      %p226 = pneg %p220
      %p227 = scmp.eq.s32.totalorder %s17, 3
      %p228 = por %p226, %p227
      %p229 = scmp.ne.s32.totalorder %s221, %s224
      %p230 = scmp.eq.s32.totalorder %s17, 0
      %p231 = por %p229, %p230
      %p232 = scmp.ne.s32.totalorder %s221, %s224
      %p233 = scmp.eq.s32.totalorder %s22, 3
      %p234 = por %p232, %p233
      %p235 = scmp.ne.s32.totalorder %s224, %s225
      %p236 = scmp.eq.s32.totalorder %s22, 0
      %p237 = por %p235, %p236
      %p238 = scmp.ne.s32.totalorder %s224, %s225
      %p239 = scmp.eq.s32.totalorder %s23, 3
      %p240 = por %p238, %p239
      %p242 = scmp.ne.s32.totalorder %s225, %s241
      %p243 = scmp.eq.s32.totalorder %s23, 0
      %p244 = por %p242, %p243
      %p245 = scmp.le.s32.totalorder 1, %s17
      %p246 = scmp.lt.s32.totalorder %s17, 5
      %p247 = pnand %p245, %p246
      %p248 = pneg %p247
      // Predicated region
      $region9: #{neural_network_forward.1} parent=5 // pred_check
        _
      $region10: #{neural_network_forward.1} parent=5 // pred_check_branch
        %250 = sbr.rel (%p247) target = $region12
      $region11: #{neural_network_forward.1} parent=5 // pred_region
        %s251 = ssub.s32 %s17, 1
        // Predicated region
        $region13: #{neural_network_forward.1} parent=11 // pred_check
          %p252 = pneg %p64
        $region14: #{neural_network_forward.1} parent=11 // pred_check_branch
          %254 = sbr.rel (%p252) target = $region16
        $region15: #{neural_network_forward.1} parent=11 // pred_region
          _
        $region16: #{neural_network_forward.1} parent=11 // pred_fallthru
          _
        // Predicated region
        $region17: #{neural_network_forward.1} parent=11 // pred_check
          %p255 = pneg %p85
        $region18: #{neural_network_forward.1} parent=11 // pred_check_branch
          %257 = sbr.rel (%p255) target = $region20
        $region19: #{neural_network_forward.1} parent=11 // pred_region
          _
        $region20: #{neural_network_forward.1} parent=11 // pred_fallthru
          _
        // Predicated region
        $region21: #{neural_network_forward.1} parent=11 // pred_check
          %p258 = pneg %p106
        $region22: #{neural_network_forward.1} parent=11 // pred_check_branch
          %260 = sbr.rel (%p258) target = $region24
        $region23: #{neural_network_forward.1} parent=11 // pred_region
          _
        $region24: #{neural_network_forward.1} parent=11 // pred_fallthru
          _
        // Predicated region
        $region25: #{neural_network_forward.1} parent=11 // pred_check
          %p261 = pneg %p127
        $region26: #{neural_network_forward.1} parent=11 // pred_check_branch
          %263 = sbr.rel (%p261) target = $region28
        $region27: #{neural_network_forward.1} parent=11 // pred_region
          %s265 = ssub.s32 2048, 2048
          %266 = vsyncadd [#allocation3], %s265
          %s267 = sshll.u32 [#allocation2], 4
          %s268 = int_to_ptr.vmem [resolvable:$true] %s267
          %273 = dma.hbm_to_vmem [thread:$0]  %s4, 2048, %s268, [#allocation3], 128, 128, 8
        $region28: #{neural_network_forward.1} parent=11 // pred_fallthru
          _
        // Predicated region
        $region29: #{neural_network_forward.1} parent=11 // pred_check
          %p274 = pneg %p148
        $region30: #{neural_network_forward.1} parent=11 // pred_check_branch
          %276 = sbr.rel (%p274) target = $region32
        $region31: #{neural_network_forward.1} parent=11 // pred_region
          _
        $region32: #{neural_network_forward.1} parent=11 // pred_fallthru
          _
        // Predicated region
        $region33: #{neural_network_forward.1} parent=11 // pred_check
          %p277 = pneg %p169
        $region34: #{neural_network_forward.1} parent=11 // pred_check_branch
          %279 = sbr.rel (%p277) target = $region36
        $region35: #{neural_network_forward.1} parent=11 // pred_region
          _
        $region36: #{neural_network_forward.1} parent=11 // pred_fallthru
          _
        // Predicated region
        $region37: #{neural_network_forward.1} parent=11 // pred_check
          %p280 = pneg %p190
        $region38: #{neural_network_forward.1} parent=11 // pred_check_branch
          %282 = sbr.rel (%p280) target = $region40
        $region39: #{neural_network_forward.1} parent=11 // pred_region
          %s284 = ssub.s32 2048, 2048
          %285 = vsyncadd [#allocation5], %s284
          %s286 = sshll.u32 [#allocation4], 4
          %s287 = int_to_ptr.vmem [resolvable:$true] %s286
          %292 = dma.hbm_to_vmem [thread:$0]  %s7, 2048, %s287, [#allocation5], 64, 64, 4
        $region40: #{neural_network_forward.1} parent=11 // pred_fallthru
          _
        // Predicated region
        $region41: #{neural_network_forward.1} parent=11 // pred_check
          %p293 = pneg %p211
        $region42: #{neural_network_forward.1} parent=11 // pred_check_branch
          %295 = sbr.rel (%p293) target = $region44
        $region43: #{neural_network_forward.1} parent=11 // pred_region
          _
        $region44: #{neural_network_forward.1} parent=11 // pred_fallthru
          _
      $region12: #{neural_network_forward.1} parent=5 // pred_fallthru
        _
      %p296 = scmp.lt.s32.totalorder %s17, 4
      // Predicated region
      $region45: #{neural_network_forward.1} parent=5 // pred_check
        %p297 = pneg %p296
      $region46: #{neural_network_forward.1} parent=5 // pred_check_branch
        %299 = sbr.rel (%p297) target = $region48
      $region47: #{neural_network_forward.1} parent=5 // pred_region
        // Predicated region
        $region49: #{neural_network_forward.1} parent=47 // pred_check
          %p300 = pneg %p37
        $region50: #{neural_network_forward.1} parent=47 // pred_check_branch
          %302 = sbr.rel (%p300) target = $region52
        $region51: #{neural_network_forward.1} parent=47 // pred_region
          %p303 = scmp.lt.s32.totalorder %s17, 3
          %s304 = scalar_select %p303, %s17, 3
          %s305 = smul.addr %s304, 8
          %s306 = scalar_lea.vmem %s0, %s305
        $region52: #{neural_network_forward.1} parent=47 // pred_fallthru
          _
      $region48: #{neural_network_forward.1} parent=5 // pred_fallthru
        _
      %p307 = scmp.le.s32.totalorder 1, %s17
      %p308 = scmp.lt.s32.totalorder %s17, 5
      %p309 = pnand %p307, %p308
      %p310 = pneg %p309
      // Predicated region
      $region53: #{neural_network_forward.1} parent=5 // pred_check
        _
      $region54: #{neural_network_forward.1} parent=5 // pred_check_branch
        %312 = sbr.rel (%p309) target = $region56
      $region55: #{neural_network_forward.1} parent=5 // pred_region
        %s313 = ssub.s32 %s17, 1
        // Predicated region
        $region57: #{neural_network_forward.1} parent=55 // pred_check
          %p314 = pneg %p127
        $region58: #{neural_network_forward.1} parent=55 // pred_check_branch
          %316 = sbr.rel (%p314) target = $region60
        $region59: #{neural_network_forward.1} parent=55 // pred_region
          %317 = dma.done [#allocation3], 2048
        $region60: #{neural_network_forward.1} parent=55 // pred_fallthru
          _
        // Predicated region
        $region61: #{neural_network_forward.1} parent=55 // pred_check
          %p318 = pneg %p190
        $region62: #{neural_network_forward.1} parent=55 // pred_check_branch
          %320 = sbr.rel (%p318) target = $region64
        $region63: #{neural_network_forward.1} parent=55 // pred_region
          %321 = dma.done [#allocation5], 2048
        $region64: #{neural_network_forward.1} parent=55 // pred_fallthru
          _
        %p322 = scmp.lt.s32.totalorder %s22, 3
        %s323 = scalar_select %p322, %s22, 3
        %s324 = smul.addr %s323, 8
        %s325 = scalar_lea.vmem %s0, %s324
        %p326 = pneg %p43
        %p327 = pneg %p40
        %p328 = pneg %p64
        %p329 = pneg %p61
        %p330 = pneg %p85
        %p331 = pneg %p82
        %p332 = pneg %p106
        %p333 = pneg %p103
        %p334 = pneg %p127
        %p335 = pneg %p124
        %p336 = pneg %p148
        %p337 = pneg %p145
        %p338 = pneg %p169
        %p339 = pneg %p166
        %p340 = pneg %p190
        %p341 = pneg %p187
        %p342 = pneg %p211
        %p343 = pneg %p208
        %p344 = pneg %p237
        %p345 = pneg %p234
        %p346 = scmp.lt.s32.totalorder %s22, 3
        %s347 = scalar_select %p346, %s22, 3
        %s348 = smul.addr %s347, 8
        %s349 = scalar_lea.vmem %s9, %s348
        %p350 = scmp.lt.s32.totalorder %s22, 3
        %s351 = scalar_select %p350, %s22, 3
        %s352 = smul.addr %s351, 8
        %s353 = scalar_lea.vmem %s0, %s352
        %p354 = scmp.lt.s32.totalorder %s22, 3
        %s355 = scalar_select %p354, %s22, 3
        %s356 = smul.addr %s355, 8
        %s357 = scalar_lea.vmem %s9, %s356
        %v359 = vld [vmem:[%s353] sm:$0xff]
        %v360 = vpack.c.bf16 %v359, %v359
        %v361 = vld [vmem:[%s1] sm:$0xf]
        %v362 = vld [vmem:[%s1 + $0x4] sm:$0xf]
        %v363 = vld [vmem:[%s1 + $0x8] sm:$0xf]
        %v364 = vld [vmem:[%s1 + $0xc] sm:$0xf]
        %v365 = vld [vmem:[%s1 + $0x10] sm:$0xf]
        %v366 = vld [vmem:[%s1 + $0x14] sm:$0xf]
        %v367 = vld [vmem:[%s1 + $0x18] sm:$0xf]
        %v368 = vld [vmem:[%s1 + $0x1c] sm:$0xf]
        %v369 = vld [vmem:[%s1 + $0x20] sm:$0xf]
        %v370 = vld [vmem:[%s1 + $0x24] sm:$0xf]
        %v371 = vld [vmem:[%s1 + $0x28] sm:$0xf]
        %v372 = vld [vmem:[%s1 + $0x2c] sm:$0xf]
        %v373 = vld [vmem:[%s1 + $0x30] sm:$0xf]
        %v374 = vld [vmem:[%s1 + $0x34] sm:$0xf]
        %v375 = vld [vmem:[%s1 + $0x38] sm:$0xf]
        %v376 = vld [vmem:[%s1 + $0x3c] sm:$0xf]
        %v393 = vunpack.c.l.b16 %v361
        %v394 = vunpack.c.l.b16 %v362
        %v395 = vunpack.c.l.b16 %v363
        %v396 = vunpack.c.l.b16 %v364
        %v397 = vunpack.c.l.b16 %v365
        %v398 = vunpack.c.l.b16 %v366
        %v399 = vunpack.c.l.b16 %v367
        %v400 = vunpack.c.l.b16 %v368
        %v401 = vunpack.c.l.b16 %v369
        %v402 = vunpack.c.l.b16 %v370
        %v403 = vunpack.c.l.b16 %v371
        %v404 = vunpack.c.l.b16 %v372
        %v405 = vunpack.c.l.b16 %v373
        %v406 = vunpack.c.l.b16 %v374
        %v407 = vunpack.c.l.b16 %v375
        %v408 = vunpack.c.l.b16 %v376
        %v409 = vpack.c.b16 %v394, %v393
        %v410 = vpack.c.b16 %v396, %v395
        %v411 = vpack.c.b16 %v398, %v397
        %v412 = vpack.c.b16 %v400, %v399
        %v413 = vpack.c.b16 %v402, %v401
        %v414 = vpack.c.b16 %v404, %v403
        %v415 = vpack.c.b16 %v406, %v405
        %v416 = vpack.c.b16 %v408, %v407
        %425 = vmatprep.subr.bf16.mxu0 0
        %426 = vmatpush1.bf16.msra.mxu0 %v409
        %427 = vmatprep.subr.bf16.mxu0 0
        %428 = vmatpush1.bf16.msra.mxu0 %v410
        %429 = vmatprep.subr.bf16.mxu0 0
        %430 = vmatpush1.bf16.msra.mxu0 %v411
        %431 = vmatprep.subr.bf16.mxu0 0
        %432 = vmatpush1.bf16.msra.mxu0 %v412
        %433 = vmatprep.subr.bf16.mxu0 0
        %434 = vmatpush1.bf16.msra.mxu0 %v413
        %435 = vmatprep.subr.bf16.mxu0 0
        %436 = vmatpush1.bf16.msra.mxu0 %v414
        %437 = vmatprep.subr.bf16.mxu0 0
        %438 = vmatpush1.bf16.msra.mxu0 %v415
        %439 = vmatprep.subr.bf16.mxu0 0
        %440 = vmatpush1.bf16.msra.mxu0 %v416
        %441 = vmatprep.subr.bf16.mxu0 0
        %442 = vmatpush1.bf16.msra.mxu0 0
        %443 = vmatprep.subr.bf16.mxu0 0
        %444 = vmatpush1.bf16.msra.mxu0 0
        %445 = vmatprep.subr.bf16.mxu0 0
        %446 = vmatpush1.bf16.msra.mxu0 0
        %447 = vmatprep.subr.bf16.mxu0 0
        %448 = vmatpush1.bf16.msra.mxu0 0
        %449 = vmatprep.subr.bf16.mxu0 0
        %450 = vmatpush1.bf16.msra.mxu0 0
        %451 = vmatprep.subr.bf16.mxu0 0
        %452 = vmatpush1.bf16.msra.mxu0 0
        %453 = vmatprep.subr.bf16.mxu0 0
        %454 = vmatpush1.bf16.msra.mxu0 0
        %455 = vmatprep.subr.bf16.mxu0 0
        %456 = vmatpush1.bf16.msra.mxu0 0
        %457 = vmatprep.mubr.bf16.mxu0 0
        %458 = vmatmul.mubr.bf16.gmra.mrb[0].mxu0 %v360
        %v459 = vpop.f32.mrb[0].mxu0
        %v460 = vadd.f32 0.0, %v459
        %v461 = vpop.f32.mrb[0].mxu0
        %v462 = vpop.f32.mrb[0].mxu0
        %v463 = vpop.f32.mrb[0].mxu0
        %464 = vdwg.mxu0
        %v465 = vrot.slane %v460, 4
        %v466 = vadd.f32 %v460, %v465
        %v467 = vrot.slane %v466, 2
        %v468 = vadd.f32 %v466, %v467
        %v469 = vrot.slane %v468, 1
        %v470 = vadd.f32 %v468, %v469
        %v471 = vrcp.pop 8.0
        %v472 = vmul.f32 %v470, %v471
        %v473 = vsub.f32 %v460, %v472
        %v474 = vmul.f32 %v473, %v473
        %v475 = vrot.slane %v474, 4
        %v476 = vadd.f32 %v474, %v475
        %v477 = vrot.slane %v476, 2
        %v478 = vadd.f32 %v476, %v477
        %v479 = vrot.slane %v478, 1
        %v480 = vadd.f32 %v478, %v479
        %v481 = vmul.f32 %v480, %v471
        %v482 = vld [vmem:[%s2] sm:$0x1]
        %v483 = vadd.f32 %v481, 1e-05
        %v484 = vrsqrt.pop %v483
        %v485 = vmul.f32 %v482, %v484
        %v486 = vld [vmem:[%s3] sm:$0x1]
        %v487 = vmul.f32 %v472, %v485
        %v488 = vsub.f32 %v486, %v487
        %v490 = vlaneseq
        %v491 = vshrl.u32 %v490, 7
        %v492 = vsub.s32 0, %v491
        %v493 = vrot.slane %v485, %v492
        %v495 = vmul.f32 %v460, %v493
        %v497 = vlaneseq
        %v498 = vshrl.u32 %v497, 7
        %v499 = vsub.s32 0, %v498
        %v500 = vrot.slane %v488, %v499
        %v502 = vadd.f32 %v495, %v500
        %v503 = vpack.c.bf16 %v502, %v502
        %v504 = vld [vmem:[#allocation2] sm:$0xff]
        %v505 = vld [vmem:[#allocation2 + $0x8] sm:$0xff]
        %v506 = vld [vmem:[#allocation2 + $0x10] sm:$0xff]
        %v507 = vld [vmem:[#allocation2 + $0x18] sm:$0xff]
        %v508 = vld [vmem:[#allocation2 + $0x20] sm:$0xff]
        %v509 = vld [vmem:[#allocation2 + $0x28] sm:$0xff]
        %v510 = vld [vmem:[#allocation2 + $0x30] sm:$0xff]
        %v511 = vld [vmem:[#allocation2 + $0x38] sm:$0xff]
        %v512 = vld [vmem:[#allocation2 + $0x40] sm:$0xff]
        %v513 = vld [vmem:[#allocation2 + $0x48] sm:$0xff]
        %v514 = vld [vmem:[#allocation2 + $0x50] sm:$0xff]
        %v515 = vld [vmem:[#allocation2 + $0x58] sm:$0xff]
        %v516 = vld [vmem:[#allocation2 + $0x60] sm:$0xff]
        %v517 = vld [vmem:[#allocation2 + $0x68] sm:$0xff]
        %v518 = vld [vmem:[#allocation2 + $0x70] sm:$0xff]
        %v519 = vld [vmem:[#allocation2 + $0x78] sm:$0xff]
        %v536 = vunpack.c.l.b16 %v504
        %v537 = vunpack.c.h.b16 %v504
        %v538 = vunpack.c.l.b16 %v505
        %v539 = vunpack.c.h.b16 %v505
        %v540 = vunpack.c.l.b16 %v506
        %v541 = vunpack.c.h.b16 %v506
        %v542 = vunpack.c.l.b16 %v507
        %v543 = vunpack.c.h.b16 %v507
        %v544 = vunpack.c.l.b16 %v508
        %v545 = vunpack.c.h.b16 %v508
        %v546 = vunpack.c.l.b16 %v509
        %v547 = vunpack.c.h.b16 %v509
        %v548 = vunpack.c.l.b16 %v510
        %v549 = vunpack.c.h.b16 %v510
        %v550 = vunpack.c.l.b16 %v511
        %v551 = vunpack.c.h.b16 %v511
        %v552 = vunpack.c.l.b16 %v512
        %v553 = vunpack.c.h.b16 %v512
        %v554 = vunpack.c.l.b16 %v513
        %v555 = vunpack.c.h.b16 %v513
        %v556 = vunpack.c.l.b16 %v514
        %v557 = vunpack.c.h.b16 %v514
        %v558 = vunpack.c.l.b16 %v515
        %v559 = vunpack.c.h.b16 %v515
        %v560 = vunpack.c.l.b16 %v516
        %v561 = vunpack.c.h.b16 %v516
        %v562 = vunpack.c.l.b16 %v517
        %v563 = vunpack.c.h.b16 %v517
        %v564 = vunpack.c.l.b16 %v518
        %v565 = vunpack.c.h.b16 %v518
        %v566 = vunpack.c.l.b16 %v519
        %v567 = vunpack.c.h.b16 %v519
        %v568 = vpack.c.b16 %v538, %v536
        %v569 = vpack.c.b16 %v539, %v537
        %v570 = vpack.c.b16 %v542, %v540
        %v571 = vpack.c.b16 %v543, %v541
        %v572 = vpack.c.b16 %v546, %v544
        %v573 = vpack.c.b16 %v547, %v545
        %v574 = vpack.c.b16 %v550, %v548
        %v575 = vpack.c.b16 %v551, %v549
        %v576 = vpack.c.b16 %v554, %v552
        %v577 = vpack.c.b16 %v555, %v553
        %v578 = vpack.c.b16 %v558, %v556
        %v579 = vpack.c.b16 %v559, %v557
        %v580 = vpack.c.b16 %v562, %v560
        %v581 = vpack.c.b16 %v563, %v561
        %v582 = vpack.c.b16 %v566, %v564
        %v583 = vpack.c.b16 %v567, %v565
        %600 = vmatprep.subr.bf16.mxu0 %v569
        %601 = vmatpush1.bf16.msra.mxu0 %v568
        %602 = vmatprep.subr.bf16.mxu0 %v571
        %603 = vmatpush1.bf16.msra.mxu0 %v570
        %604 = vmatprep.subr.bf16.mxu0 %v573
        %605 = vmatpush1.bf16.msra.mxu0 %v572
        %606 = vmatprep.subr.bf16.mxu0 %v575
        %607 = vmatpush1.bf16.msra.mxu0 %v574
        %608 = vmatprep.subr.bf16.mxu0 %v577
        %609 = vmatpush1.bf16.msra.mxu0 %v576
        %610 = vmatprep.subr.bf16.mxu0 %v579
        %611 = vmatpush1.bf16.msra.mxu0 %v578
        %612 = vmatprep.subr.bf16.mxu0 %v581
        %613 = vmatpush1.bf16.msra.mxu0 %v580
        %614 = vmatprep.subr.bf16.mxu0 %v583
        %615 = vmatpush1.bf16.msra.mxu0 %v582
        %616 = vmatprep.subr.bf16.mxu0 0
        %617 = vmatpush1.bf16.msra.mxu0 0
        %618 = vmatprep.subr.bf16.mxu0 0
        %619 = vmatpush1.bf16.msra.mxu0 0
        %620 = vmatprep.subr.bf16.mxu0 0
        %621 = vmatpush1.bf16.msra.mxu0 0
        %622 = vmatprep.subr.bf16.mxu0 0
        %623 = vmatpush1.bf16.msra.mxu0 0
        %624 = vmatprep.subr.bf16.mxu0 0
        %625 = vmatpush1.bf16.msra.mxu0 0
        %626 = vmatprep.subr.bf16.mxu0 0
        %627 = vmatpush1.bf16.msra.mxu0 0
        %628 = vmatprep.subr.bf16.mxu0 0
        %629 = vmatpush1.bf16.msra.mxu0 0
        %630 = vmatprep.subr.bf16.mxu0 0
        %631 = vmatpush1.bf16.msra.mxu0 0
        %632 = vmatprep.mubr.bf16.mxu0 0
        %633 = vmatmul.mubr.bf16.gmra.mrb[0].mxu0 %v503
        %v634 = vpop.f32.mrb[0].mxu0
        %v635 = vadd.f32 0.0, %v634
        %v636 = vpop.f32.mrb[0].mxu0
        %v637 = vadd.f32 0.0, %v636
        %v638 = vpop.f32.mrb[0].mxu0
        %v639 = vpop.f32.mrb[0].mxu0
        %640 = vdwg.mxu0
        %v641 = vrot.slane %v635, 4
        %v642 = vadd.f32 %v635, %v641
        %v643 = vrot.slane %v642, 2
        %v644 = vadd.f32 %v642, %v643
        %v645 = vrot.slane %v644, 1
        %v646 = vadd.f32 %v644, %v645
        %v647 = vrot.slane %v637, 4
        %v648 = vadd.f32 %v637, %v647
        %v649 = vrot.slane %v648, 2
        %v650 = vadd.f32 %v648, %v649
        %v651 = vrot.slane %v650, 1
        %v652 = vadd.f32 %v650, %v651
        %v653 = vmul.f32 %v646, %v471
        %v654 = vmul.f32 %v652, %v471
        %v655 = vsub.f32 %v635, %v653
        %v656 = vsub.f32 %v637, %v654
        %v657 = vmul.f32 %v655, %v655
        %v658 = vmul.f32 %v656, %v656
        %v659 = vrot.slane %v657, 4
        %v660 = vadd.f32 %v657, %v659
        %v661 = vrot.slane %v660, 2
        %v662 = vadd.f32 %v660, %v661
        %v663 = vrot.slane %v662, 1
        %v664 = vadd.f32 %v662, %v663
        %v665 = vrot.slane %v658, 4
        %v666 = vadd.f32 %v658, %v665
        %v667 = vrot.slane %v666, 2
        %v668 = vadd.f32 %v666, %v667
        %v669 = vrot.slane %v668, 1
        %v670 = vadd.f32 %v668, %v669
        %v671 = vmul.f32 %v664, %v471
        %v672 = vmul.f32 %v670, %v471
        %v673 = vld [vmem:[%s5] sm:$0x3]
        %v674 = vadd.f32 %v671, 1e-05
        %v675 = vadd.f32 %v672, 1e-05
        %v676 = vrsqrt.pop %v674
        %v677 = vrsqrt.pop %v675
        %v680 = vcombine.low %v676, %v677
        %v682 = vunpack.c.l.s4 1966171168
        %v683 = vunpack.c.0.s8 %v682
        %v684 = vlaneseq
        %v685 = vshrl.u32 %v684, 7
        %v686 = vsub.s32 %v683, %v685
        %v687 = vrot.slane %v680, %v686
        %v689 = vunpack.c.l.s4 1966171168
        %v690 = vunpack.c.0.s8 %v689
        %v691 = vlaneseq
        %v692 = vshrl.u32 %v691, 7
        %v693 = vsub.s32 %v690, %v692
        %v694 = vrot.slane %v687, %v693
        %v696 = vmul.f32 %v673, %v694
        %v697 = vld [vmem:[%s6] sm:$0x3]
        %v699 = vlaneseq
        %v700 = vshrl.u32 %v699, 7
        %v701 = vsub.s32 0, %v700
        %v702 = vrot.slane %v696, %v701
        %v703 = vlaneseq
        %v704 = vshrl.u32 %v703, 7
        %v705 = vsub.s32 1, %v704
        %v706 = vrot.slane %v696, %v705
        %v709 = vmul.f32 %v653, %v702
        %v710 = vmul.f32 %v654, %v706
        %v713 = vcombine.low %v709, %v710
        %v715 = vunpack.c.l.s4 1966171168
        %v716 = vunpack.c.0.s8 %v715
        %v717 = vlaneseq
        %v718 = vshrl.u32 %v717, 7
        %v719 = vsub.s32 %v716, %v718
        %v720 = vrot.slane %v713, %v719
        %v722 = vunpack.c.l.s4 1966171168
        %v723 = vunpack.c.0.s8 %v722
        %v724 = vlaneseq
        %v725 = vshrl.u32 %v724, 7
        %v726 = vsub.s32 %v723, %v725
        %v727 = vrot.slane %v720, %v726
        %v729 = vsub.f32 %v697, %v727
        %v730 = vmul.f32 %v635, %v702
        %v731 = vmul.f32 %v637, %v706
        %v733 = vlaneseq
        %v734 = vshrl.u32 %v733, 7
        %v735 = vsub.s32 0, %v734
        %v736 = vrot.slane %v729, %v735
        %v737 = vlaneseq
        %v738 = vshrl.u32 %v737, 7
        %v739 = vsub.s32 1, %v738
        %v740 = vrot.slane %v729, %v739
        %v743 = vadd.f32 %v730, %v736
        %v744 = vadd.f32 %v731, %v740
        %v745 = vpack.c.bf16 %v743, %v743
        %v746 = vpack.c.bf16 %v744, %v744
        %v747 = vld [vmem:[#allocation4] sm:$0xf]
        %v748 = vld [vmem:[#allocation4 + $0x4] sm:$0xf]
        %v749 = vld [vmem:[#allocation4 + $0x8] sm:$0xf]
        %v750 = vld [vmem:[#allocation4 + $0xc] sm:$0xf]
        %v751 = vld [vmem:[#allocation4 + $0x10] sm:$0xf]
        %v752 = vld [vmem:[#allocation4 + $0x14] sm:$0xf]
        %v753 = vld [vmem:[#allocation4 + $0x18] sm:$0xf]
        %v754 = vld [vmem:[#allocation4 + $0x1c] sm:$0xf]
        %v755 = vld [vmem:[#allocation4 + $0x20] sm:$0xf]
        %v756 = vld [vmem:[#allocation4 + $0x24] sm:$0xf]
        %v757 = vld [vmem:[#allocation4 + $0x28] sm:$0xf]
        %v758 = vld [vmem:[#allocation4 + $0x2c] sm:$0xf]
        %v759 = vld [vmem:[#allocation4 + $0x30] sm:$0xf]
        %v760 = vld [vmem:[#allocation4 + $0x34] sm:$0xf]
        %v761 = vld [vmem:[#allocation4 + $0x38] sm:$0xf]
        %v762 = vld [vmem:[#allocation4 + $0x3c] sm:$0xf]
        %v763 = vld [vmem:[#allocation4 + $0x40] sm:$0xf]
        %v764 = vld [vmem:[#allocation4 + $0x44] sm:$0xf]
        %v765 = vld [vmem:[#allocation4 + $0x48] sm:$0xf]
        %v766 = vld [vmem:[#allocation4 + $0x4c] sm:$0xf]
        %v767 = vld [vmem:[#allocation4 + $0x50] sm:$0xf]
        %v768 = vld [vmem:[#allocation4 + $0x54] sm:$0xf]
        %v769 = vld [vmem:[#allocation4 + $0x58] sm:$0xf]
        %v770 = vld [vmem:[#allocation4 + $0x5c] sm:$0xf]
        %v771 = vld [vmem:[#allocation4 + $0x60] sm:$0xf]
        %v772 = vld [vmem:[#allocation4 + $0x64] sm:$0xf]
        %v773 = vld [vmem:[#allocation4 + $0x68] sm:$0xf]
        %v774 = vld [vmem:[#allocation4 + $0x6c] sm:$0xf]
        %v775 = vld [vmem:[#allocation4 + $0x70] sm:$0xf]
        %v776 = vld [vmem:[#allocation4 + $0x74] sm:$0xf]
        %v777 = vld [vmem:[#allocation4 + $0x78] sm:$0xf]
        %v778 = vld [vmem:[#allocation4 + $0x7c] sm:$0xf]
        %v779 = vld [vmem:[%s8] sm:$0x1]
        %v781 = vlaneseq
        %v782 = vshrl.u32 %v781, 7
        %v783 = vsub.s32 0, %v782
        %v784 = vrot.slane %v779, %v783
        %v818 = vunpack.c.l.b16 %v747
        %v819 = vunpack.c.l.b16 %v748
        %v820 = vunpack.c.l.b16 %v749
        %v821 = vunpack.c.l.b16 %v750
        %v822 = vunpack.c.l.b16 %v751
        %v823 = vunpack.c.l.b16 %v752
        %v824 = vunpack.c.l.b16 %v753
        %v825 = vunpack.c.l.b16 %v754
        %v826 = vunpack.c.l.b16 %v755
        %v827 = vunpack.c.l.b16 %v756
        %v828 = vunpack.c.l.b16 %v757
        %v829 = vunpack.c.l.b16 %v758
        %v830 = vunpack.c.l.b16 %v759
        %v831 = vunpack.c.l.b16 %v760
        %v832 = vunpack.c.l.b16 %v761
        %v833 = vunpack.c.l.b16 %v762
        %v834 = vunpack.c.l.b16 %v763
        %v835 = vunpack.c.l.b16 %v764
        %v836 = vunpack.c.l.b16 %v765
        %v837 = vunpack.c.l.b16 %v766
        %v838 = vunpack.c.l.b16 %v767
        %v839 = vunpack.c.l.b16 %v768
        %v840 = vunpack.c.l.b16 %v769
        %v841 = vunpack.c.l.b16 %v770
        %v842 = vunpack.c.l.b16 %v771
        %v843 = vunpack.c.l.b16 %v772
        %v844 = vunpack.c.l.b16 %v773
        %v845 = vunpack.c.l.b16 %v774
        %v846 = vunpack.c.l.b16 %v775
        %v847 = vunpack.c.l.b16 %v776
        %v848 = vunpack.c.l.b16 %v777
        %v849 = vunpack.c.l.b16 %v778
        %v850 = vpack.c.b16 %v819, %v818
        %v851 = vpack.c.b16 %v821, %v820
        %v852 = vpack.c.b16 %v823, %v822
        %v853 = vpack.c.b16 %v825, %v824
        %v854 = vpack.c.b16 %v827, %v826
        %v855 = vpack.c.b16 %v829, %v828
        %v856 = vpack.c.b16 %v831, %v830
        %v857 = vpack.c.b16 %v833, %v832
        %v858 = vpack.c.b16 %v835, %v834
        %v859 = vpack.c.b16 %v837, %v836
        %v860 = vpack.c.b16 %v839, %v838
        %v861 = vpack.c.b16 %v841, %v840
        %v862 = vpack.c.b16 %v843, %v842
        %v863 = vpack.c.b16 %v845, %v844
        %v864 = vpack.c.b16 %v847, %v846
        %v865 = vpack.c.b16 %v849, %v848
        %882 = vmatprep.subr.bf16.mxu0 0
        %883 = vmatpush1.bf16.msra.mxu0 %v850
        %884 = vmatprep.subr.bf16.mxu0 0
        %885 = vmatpush1.bf16.msra.mxu0 %v851
        %886 = vmatprep.subr.bf16.mxu0 0
        %887 = vmatpush1.bf16.msra.mxu0 %v852
        %888 = vmatprep.subr.bf16.mxu0 0
        %889 = vmatpush1.bf16.msra.mxu0 %v853
        %890 = vmatprep.subr.bf16.mxu0 0
        %891 = vmatpush1.bf16.msra.mxu0 %v854
        %892 = vmatprep.subr.bf16.mxu0 0
        %893 = vmatpush1.bf16.msra.mxu0 %v855
        %894 = vmatprep.subr.bf16.mxu0 0
        %895 = vmatpush1.bf16.msra.mxu0 %v856
        %896 = vmatprep.subr.bf16.mxu0 0
        %897 = vmatpush1.bf16.msra.mxu0 %v857
        %898 = vmatprep.subr.bf16.mxu0 0
        %899 = vmatpush1.bf16.msra.mxu0 %v858
        %900 = vmatprep.subr.bf16.mxu0 0
        %901 = vmatpush1.bf16.msra.mxu0 %v859
        %902 = vmatprep.subr.bf16.mxu0 0
        %903 = vmatpush1.bf16.msra.mxu0 %v860
        %904 = vmatprep.subr.bf16.mxu0 0
        %905 = vmatpush1.bf16.msra.mxu0 %v861
        %906 = vmatprep.subr.bf16.mxu0 0
        %907 = vmatpush1.bf16.msra.mxu0 %v862
        %908 = vmatprep.subr.bf16.mxu0 0
        %909 = vmatpush1.bf16.msra.mxu0 %v863
        %910 = vmatprep.subr.bf16.mxu0 0
        %911 = vmatpush1.bf16.msra.mxu0 %v864
        %912 = vmatprep.subr.bf16.mxu0 0
        %913 = vmatpush1.bf16.msra.mxu0 %v865
        %914 = vmatprep.mubr.bf16.mxu0 %v746
        %915 = vmatmul.mubr.bf16.gmra.mrb[0].mxu0 %v745
        %v916 = vpop.f32.mrb[0].mxu0
        %v917 = vadd.f32 %v784, %v916
        %v918 = vpop.f32.mrb[0].mxu0
        %v919 = vpop.f32.mrb[0].mxu0
        %v920 = vpop.f32.mrb[0].mxu0
        %921 = vdwg.mxu0
        %922 = vst [vmem:[%s357] sm:$0xff] %v917
        %p923 = scmp.lt.s32.totalorder %s22, 3
        %s924 = scalar_select %p923, %s22, 3
        %s925 = smul.addr %s924, 8
        %s926 = scalar_lea.vmem %s9, %s925
        // Predicated region
        $region65: #{neural_network_forward.1} parent=55 // pred_check
          %p927 = pneg %p234
        $region66: #{neural_network_forward.1} parent=55 // pred_check_branch
          %929 = sbr.rel (%p927) target = $region68
        $region67: #{neural_network_forward.1} parent=55 // pred_region
          _
        $region68: #{neural_network_forward.1} parent=55 // pred_fallthru
          _
      $region56: #{neural_network_forward.1} parent=5 // pred_fallthru
        _
      %p930 = scmp.le.s32.totalorder 2, %s17
      // Predicated region
      $region69: #{neural_network_forward.1} parent=5 // pred_check
        %p931 = pneg %p930
      $region70: #{neural_network_forward.1} parent=5 // pred_check_branch
        %933 = sbr.rel (%p931) target = $region72
      $region71: #{neural_network_forward.1} parent=5 // pred_region
        %s934 = ssub.s32 %s17, 2
        // Predicated region
        $region73: #{neural_network_forward.1} parent=71 // pred_check
          %p935 = pneg %p240
        $region74: #{neural_network_forward.1} parent=71 // pred_check_branch
          %937 = sbr.rel (%p935) target = $region76
        $region75: #{neural_network_forward.1} parent=71 // pred_region
          %p938 = scmp.lt.s32.totalorder %s23, 3
          %s939 = scalar_select %p938, %s23, 3
          %s940 = smul.addr %s939, 8
          %s941 = scalar_lea.vmem %s9, %s940
        $region76: #{neural_network_forward.1} parent=71 // pred_fallthru
          _
      $region72: #{neural_network_forward.1} parent=5 // pred_fallthru
        _
    $region6: #{neural_network_forward.1} parent=1 // loop_footer
      %s21 = sadd.s32 1, %s17
    $region7: #{neural_network_forward.1} parent=1 // loop_footer_branch
      %16 = sbr.rel target = $region3
    $region8: #{neural_network_forward.1} parent=1 // loop_exit
      _
    %942 = vsyncpa [#allocation3], 1
    %s943 = scalar_lea.sflag [#allocation3], 1
    %944 = vsyncpa %s943, 1
    %945 = vsyncpa [#allocation5], 1

</llo_original>
